<compile_context>
chip_gen: v6e
topology: v6e:2x2x1
jax: 0.10.0
libtpu: 0.0.40
codegen_flags: <defaults>
</compile_context>

<pallas_src>
import functools

import jax
import jax.numpy as jnp
from jax import lax
from jax.experimental import pallas as pl
from jax.experimental.pallas import tpu as pltpu

ALPHA = 1.0
GAMMA = 2.0
XENT = 0.1


def _num_tensorcores_per_chip():
    # The 2-way "parallel" split only pays on v7x (2 TensorCores/chip);
    # v5e/v6e have a single TensorCore, where it just adds a wasted clamped
    # padding-tile DMA on the short core.
    try:
        kind = jax.devices()[0].device_kind.lower()
    except Exception:
        return 1
    return 2 if ("v7" in kind or "7x" in kind) else 1


def _focal_cosine_kernel(x_ref, t_ref, out_ref, acc_ref, *,
                         alpha, gamma, xent, n_rows, row_tile,
                         n_tiles, tiles_per_core):
    p = pl.program_id(0)                       # core index      ("parallel")
    i = pl.program_id(1)                       # tile-in-core    ("arbitrary")
    tile_idx = p * tiles_per_core + i          # global row-tile index

    # --- per-core accumulator init (per-row partial sums, VMEM) -------------
    @pl.when(i == 0)
    def _():
        acc_ref[...] = jnp.zeros_like(acc_ref)

    # --- this tile's contribution (skip padding tiles on the short core) ----
    @pl.when(tile_idx < n_tiles)
    def _():
        x = x_ref[...].astype(jnp.float32)     # (TN, C)
        t = t_ref[...]                         # (TN, 1) int32
        tn, c = x.shape

        # Fused one-hot select: logit at target without materializing a
        # (TN, C) one-hot (saves an int->f32 cast and a multiply per element).
        col = lax.broadcasted_iota(jnp.int32, (tn, c), 1)
        x_at_t = jnp.sum(jnp.where(col == t, x, 0.0), axis=-1, keepdims=True)

        # Row norms: one (TN, C) cross-lane reduce.
        norm = jnp.sqrt(jnp.sum(x * x, axis=-1, keepdims=True))    # (TN, 1)

        # Exact reciprocals on the tiny (TN, 1) vectors (torch eps semantics).
        inv_cos = 1.0 / jnp.maximum(norm, 1e-8)    # cosine-similarity eps
        inv_nrm = 1.0 / jnp.maximum(norm, 1e-12)   # F.normalize eps

        # cosine embedding loss with y = +1: 1 - cos(x, onehot)
        cos = x_at_t * inv_cos                                      # (TN, 1)

        # Cross entropy on L2-normalized logits. No max-shift needed:
        # |xn_ij| = |x_ij| / max(||x_i||, eps) <= 1 always, so exp(xn) is in
        # [1/e, e].  (Invariant: only exponentiate *normalized* logits.)
        xn = x * inv_nrm                                            # (TN, C)
        lse = jnp.log(jnp.sum(jnp.exp(xn), axis=-1, keepdims=True))
        cent = lse - x_at_t * inv_nrm                               # (TN, 1)

        # Focal weighting; integer gamma -> repeated multiply (no pow).
        pt = jnp.exp(-cent)
        omp = jnp.maximum(1.0 - pt, 0.0)
        if float(gamma) == int(gamma) and int(gamma) >= 0:
            w = jnp.ones_like(omp)
            for _ in range(int(gamma)):
                w = w * omp
        else:
            w = omp ** gamma
        focal = alpha * w * cent                                    # (TN, 1)

        # Single fused per-row contribution; mask the padded rows of the last
        # (partial) tile as the LAST op so Inf/NaN from undefined VMEM rows
        # can never leak into the accumulator.
        contrib = (1.0 - cos) + xent * focal                        # (TN, 1)
        rows = tile_idx * row_tile + lax.broadcasted_iota(
            jnp.int32, (tn, 1), 0)
        valid = rows < n_rows
        acc_ref[...] += jnp.where(valid, contrib, 0.0)

    # --- finalize: reduce per-row partials once, write this core's sum ------
    @pl.when(i == pl.num_programs(1) - 1)
    def _():
        partial = jnp.sum(acc_ref[...])
        out_ref[...] = jnp.full(out_ref.shape, partial, dtype=out_ref.dtype)


def focal_cosine_loss(inputs, targets, alpha=ALPHA, gamma=GAMMA, xent=XENT,
                      *, row_tile=None, num_cores=None,
                      target_block_bytes=4 << 20):
    n, c = inputs.shape
    itemsize = jnp.dtype(inputs.dtype).itemsize

    if num_cores is None:
        num_cores = _num_tensorcores_per_chip()

    # Row tile scaled with C so each logits block is a few MiB (amortizes the
    # ~0.35us/grid-step overhead).  Per-row bytes include the lane-padded
    # (TN, 1) int32 target buffer; the overall budget is capped so the
    # double-buffered blocks + accumulator stay v7x-safe (64 MiB VMEM).
    if row_tile is None:
        per_row_bytes = c * itemsize + 128 * 4
        vmem_cap_rows = (40 << 20) // (2 * per_row_bytes + 128 * 4)
        row_tile = target_block_bytes // per_row_bytes
        row_tile = min(max(row_tile, 512), 8192, vmem_cap_rows)
        row_tile = max(16, (row_tile // 16) * 16)   # sublane-friendly f32/bf16

    tn = n if n <= row_tile else int(row_tile)
    n_tiles = pl.cdiv(n, tn)
    nc = min(num_cores, n_tiles)
    tiles_per_core = pl.cdiv(n_tiles, nc)

    t2d = targets.astype(jnp.int32).reshape(n, 1)

    def row_block(p, i):
        # Clamp so a padding step on the short core (only possible when
        # nc > 1, i.e. on v7x) re-reads a valid tile; its compute is skipped
        # with pl.when inside the kernel.
        return (jnp.minimum(p * tiles_per_core + i, n_tiles - 1), 0)

    kernel = functools.partial(
        _focal_cosine_kernel,
        alpha=alpha, gamma=gamma, xent=xent,
        n_rows=n, row_tile=tn, n_tiles=n_tiles, tiles_per_core=tiles_per_core)

    # Explicit VMEM budget: double-buffered logits + lane-padded targets, the
    # per-row f32 accumulator scratch, and the tiny output blocks.  Capped at
    # 48 MiB so the same sizing compiles on v7x.
    logits_blk = tn * c * itemsize
    tgt_blk = tn * 128 * 4          # (TN, 1) int32 lane-pads to 128 in VMEM
    acc_blk = tn * 128 * 4          # (TN, 1) f32 scratch, lane-padded
    out_blk = 8 * 128 * 4
    vmem_need = 2 * (logits_blk + tgt_blk) + acc_blk + 2 * out_blk
    vmem_limit = int(min(48 << 20, max(2 * vmem_need, 16 << 20)))

    partials = pl.pallas_call(
        kernel,
        out_shape=jax.ShapeDtypeStruct((nc, 8, 128), jnp.float32),
        grid_spec=pltpu.PrefetchScalarGridSpec(
            num_scalar_prefetch=0,
            grid=(nc, tiles_per_core),
            in_specs=[
                pl.BlockSpec((tn, c), row_block),   # logits (native dtype)
                pl.BlockSpec((tn, 1), row_block),   # targets
            ],
            out_specs=pl.BlockSpec((1, 8, 128), lambda p, i: (p, 0, 0)),
            scratch_shapes=[pltpu.VMEM((tn, 1), jnp.float32)],
        ),
        compiler_params=pltpu.CompilerParams(
            dimension_semantics=("parallel", "arbitrary"),
            vmem_limit_bytes=vmem_limit,
        ),
    )(inputs, t2d)

    # loss = mean(1-cos) + xent*mean(focal) = (sum of per-core partials) / N
    return jnp.sum(partials[:, 0, 0]) / jnp.float32(n)


def _reference(inputs, targets, alpha=ALPHA, gamma=GAMMA, xent=XENT):
    # pure-JAX reference for sanity checking
    x = inputs.astype(jnp.float32)
    n, c = x.shape
    onehot = jax.nn.one_hot(targets, c, dtype=jnp.float32)
    norm = jnp.sqrt(jnp.sum(x * x, axis=-1, keepdims=True))
    cos = jnp.sum(x * onehot, axis=-1, keepdims=True) / jnp.maximum(norm, 1e-8)
    cosine_loss = jnp.mean(1.0 - cos)
    xn = x / jnp.maximum(norm, 1e-12)
    logp = jax.nn.log_softmax(xn, axis=-1)
    cent = -jnp.take_along_axis(logp, targets[:, None], axis=-1)[:, 0]
    pt = jnp.exp(-cent)
    focal = alpha * (1.0 - pt) ** gamma * cent
    return cosine_loss + xent * jnp.mean(focal)


if __name__ == "__main__":
    key = jax.random.PRNGKey(0)
    k1, k2 = jax.random.split(key)
    N, C = 40, 128
    inputs = jax.random.normal(k1, (N, C), dtype=jnp.float32)
    targets = jax.random.randint(k2, (N,), 0, C, dtype=jnp.int32)

    ref = _reference(inputs, targets)

    # Default path: auto tile size (single full-N tile here) and
    # generation-gated core count.
    out_auto = focal_cosine_loss(inputs, targets)
    jax.block_until_ready(out_auto)
    assert jnp.allclose(out_auto, ref, atol=1e-5, rtol=1e-5), (out_auto, ref)

    # Forced multi-tile / 2-core path: exercises the parallel core split, the
    # clamped padding tile, and the remainder-row masking (40 rows with a
    # 16-row tile -> 3 tiles, last one partial).
    out_tiled = focal_cosine_loss(inputs, targets, row_tile=16, num_cores=2)
    jax.block_until_ready(out_tiled)
    assert jnp.allclose(out_tiled, ref, atol=1e-5, rtol=1e-5), (out_tiled, ref)

    print("KERNEL_OK")
</pallas_src>

<mosaic_0001>
module attributes {stable_mosaic.version = 11 : i64} {
  func.func @_focal_cosine_kernel(%arg0: i32, %arg1: i32, %arg2: memref<40x128xf32, #tpu.memory_space<vmem>>, %arg3: memref<40x1xi32, #tpu.memory_space<vmem>>, %arg4: memref<1x8x128xf32, #tpu.memory_space<vmem>>, %arg5: memref<40x1xf32, #tpu.memory_space<vmem>>) attributes {dimension_semantics = [#tpu.dimension_semantics<parallel>, #tpu.dimension_semantics<arbitrary>], iteration_bounds = array<i64: 1, 1>, scalar_prefetch = 0 : i64, scratch_operands = 1 : i64, tpu.core_type = #tpu.core_type<tc>, window_params = [{transform_indices = @transform_0, window_bounds = array<i64: 40, 128>}, {transform_indices = @transform_1, window_bounds = array<i64: 40, 1>}, {transform_indices = @transform_2, window_bounds = array<i64: 1, 8, 128>}]} {
    %c1_i32 = arith.constant 1 : i32
    %0 = arith.muli %arg0, %c1_i32 : i32
    %1 = arith.addi %0, %arg1 : i32
    %c0_i32 = arith.constant 0 : i32
    %2 = arith.cmpi eq, %arg1, %c0_i32 : i32
    %3 = arith.extui %2 : i1 to i32
    %c0_i32_0 = arith.constant 0 : i32
    %4 = arith.cmpi ne, %3, %c0_i32_0 : i32
    scf.if %4 {
      %cst = arith.constant 0.000000e+00 : f32
      %11 = vector.broadcast %cst : f32 to vector<40x1xf32>
      %c0 = arith.constant 0 : index
      %c0_5 = arith.constant 0 : index
      %12 = vector.load %arg5[%c0, %c0_5] : memref<40x1xf32, #tpu.memory_space<vmem>>, vector<40x1xf32>
      tpu.vector_store %arg5[%c0, %c0_5], %11 {strides = array<i32>} : memref<40x1xf32, #tpu.memory_space<vmem>>, vector<40x1xf32>,
    } else {
    }
    %c1_i32_1 = arith.constant 1 : i32
    %5 = arith.cmpi slt, %1, %c1_i32_1 : i32
    %6 = arith.extui %5 : i1 to i32
    %c0_i32_2 = arith.constant 0 : i32
    %7 = arith.cmpi ne, %6, %c0_i32_2 : i32
    scf.if %7 {
      %c0 = arith.constant 0 : index
      %c0_5 = arith.constant 0 : index
      %11 = vector.load %arg2[%c0, %c0_5] : memref<40x128xf32, #tpu.memory_space<vmem>>, vector<40x128xf32>
      %c0_6 = arith.constant 0 : index
      %c0_7 = arith.constant 0 : index
      %12 = vector.load %arg3[%c0_6, %c0_7] : memref<40x1xi32, #tpu.memory_space<vmem>>, vector<40x1xi32>
      %13 = tpu.iota {dimensions = array<i32: 1>} : vector<40x128xi32>
      %14 = vector.broadcast %12 : vector<40x1xi32> to vector<40x128xi32>
      %15 = arith.cmpi eq, %13, %14 : vector<40x128xi32>
      %cst = arith.constant 0.000000e+00 : f32
      %16 = vector.broadcast %cst : f32 to vector<40x128xf32>
      %17 = arith.select %15, %11, %16 : vector<40x128xi1>, vector<40x128xf32>
      %cst_8 = arith.constant dense<0.000000e+00> : vector<40xf32>
      %18 = vector.multi_reduction <add>, %17, %cst_8 [1] : vector<40x128xf32> to vector<40xf32>
      %19 = vector.shape_cast %18 : vector<40xf32> to vector<40x1xf32>
      %20 = arith.mulf %11, %11 : vector<40x128xf32>
      %cst_9 = arith.constant dense<0.000000e+00> : vector<40xf32>
      %21 = vector.multi_reduction <add>, %20, %cst_9 [1] : vector<40x128xf32> to vector<40xf32>
      %22 = vector.shape_cast %21 : vector<40xf32> to vector<40x1xf32>
      %23 = math.sqrt %22 : vector<40x1xf32>
      %cst_10 = arith.constant 9.99999993E-9 : f32
      %24 = vector.broadcast %cst_10 : f32 to vector<40x1xf32>
      %25 = arith.maximumf %23, %24 : vector<40x1xf32>
      %cst_11 = arith.constant 1.000000e+00 : f32
      %26 = vector.broadcast %cst_11 : f32 to vector<40x1xf32>
      %27 = arith.divf %26, %25 : vector<40x1xf32>
      %cst_12 = arith.constant 9.99999996E-13 : f32
      %28 = vector.broadcast %cst_12 : f32 to vector<40x1xf32>
      %29 = arith.maximumf %23, %28 : vector<40x1xf32>
      %cst_13 = arith.constant 1.000000e+00 : f32
      %30 = vector.broadcast %cst_13 : f32 to vector<40x1xf32>
      %31 = arith.divf %30, %29 : vector<40x1xf32>
      %32 = arith.mulf %19, %27 : vector<40x1xf32>
      %33 = vector.broadcast %31 : vector<40x1xf32> to vector<40x128xf32>
      %34 = arith.mulf %11, %33 : vector<40x128xf32>
      %35 = math.exp %34 : vector<40x128xf32>
      %cst_14 = arith.constant dense<0.000000e+00> : vector<40xf32>
      %36 = vector.multi_reduction <add>, %35, %cst_14 [1] : vector<40x128xf32> to vector<40xf32>
      %37 = vector.shape_cast %36 : vector<40xf32> to vector<40x1xf32>
      %38 = math.log %37 : vector<40x1xf32>
      %39 = arith.mulf %19, %31 : vector<40x1xf32>
      %40 = arith.subf %38, %39 : vector<40x1xf32>
      %cst_15 = arith.constant 0.000000e+00 : f32
      %41 = vector.broadcast %cst_15 : f32 to vector<40x1xf32>
      %42 = arith.subf %41, %40 : vector<40x1xf32>
      %43 = math.exp %42 : vector<40x1xf32>
      %cst_16 = arith.constant 1.000000e+00 : f32
      %44 = vector.broadcast %cst_16 : f32 to vector<40x1xf32>
      %45 = arith.subf %44, %43 : vector<40x1xf32>
      %cst_17 = arith.constant 0.000000e+00 : f32
      %46 = vector.broadcast %cst_17 : f32 to vector<40x1xf32>
      %47 = arith.maximumf %45, %46 : vector<40x1xf32>
      %cst_18 = arith.constant 1.000000e+00 : f32
      %48 = vector.broadcast %cst_18 : f32 to vector<40x1xf32>
      %49 = arith.mulf %48, %47 : vector<40x1xf32>
      %50 = arith.mulf %49, %47 : vector<40x1xf32>
      %cst_19 = arith.constant 1.000000e+00 : f32
      %51 = vector.broadcast %cst_19 : f32 to vector<40x1xf32>
      %52 = arith.mulf %51, %50 : vector<40x1xf32>
      %53 = arith.mulf %52, %40 : vector<40x1xf32>
      %cst_20 = arith.constant 1.000000e+00 : f32
      %54 = vector.broadcast %cst_20 : f32 to vector<40x1xf32>
      %55 = arith.subf %54, %32 : vector<40x1xf32>
      %cst_21 = arith.constant 1.000000e-01 : f32
      %56 = vector.broadcast %cst_21 : f32 to vector<40x1xf32>
      %57 = arith.mulf %56, %53 : vector<40x1xf32>
      %58 = arith.addf %55, %57 : vector<40x1xf32>
      %c40_i32 = arith.constant 40 : i32
      %59 = arith.muli %1, %c40_i32 : i32
      %60 = tpu.iota {dimensions = array<i32: 0>} : vector<40x1xi32>
      %61 = vector.broadcast %59 : i32 to vector<40x1xi32>
      %62 = arith.addi %61, %60 : vector<40x1xi32>
      %c40_i32_22 = arith.constant 40 : i32
      %63 = vector.broadcast %c40_i32_22 : i32 to vector<40x1xi32>
      %64 = arith.cmpi slt, %62, %63 : vector<40x1xi32>
      %c0_23 = arith.constant 0 : index
      %c0_24 = arith.constant 0 : index
      %65 = vector.load %arg5[%c0_23, %c0_24] : memref<40x1xf32, #tpu.memory_space<vmem>>, vector<40x1xf32>
      %cst_25 = arith.constant 0.000000e+00 : f32
      %66 = vector.broadcast %cst_25 : f32 to vector<40x1xf32>
      %67 = arith.select %64, %58, %66 : vector<40x1xi1>, vector<40x1xf32>
      %68 = arith.addf %65, %67 : vector<40x1xf32>
      %c0_26 = arith.constant 0 : index
      %c0_27 = arith.constant 0 : index
      %69 = vector.load %arg5[%c0_26, %c0_27] : memref<40x1xf32, #tpu.memory_space<vmem>>, vector<40x1xf32>
      tpu.vector_store %arg5[%c0_26, %c0_27], %68 {strides = array<i32>} : memref<40x1xf32, #tpu.memory_space<vmem>>, vector<40x1xf32>,
    } else {
    }
    %c0_i32_3 = arith.constant 0 : i32
    %8 = arith.cmpi eq, %arg1, %c0_i32_3 : i32
    %9 = arith.extui %8 : i1 to i32
    %c0_i32_4 = arith.constant 0 : i32
    %10 = arith.cmpi ne, %9, %c0_i32_4 : i32
    scf.if %10 {
      %c0 = arith.constant 0 : index
      %c0_5 = arith.constant 0 : index
      %11 = vector.load %arg5[%c0, %c0_5] : memref<40x1xf32, #tpu.memory_space<vmem>>, vector<40x1xf32>
      %12 = vector.shape_cast %11 : vector<40x1xf32> to vector<1x40x1xf32>
      %cst = arith.constant dense<0.000000e+00> : vector<1xf32>
      %13 = vector.multi_reduction <add>, %12, %cst [1, 2] : vector<1x40x1xf32> to vector<1xf32>
      %14 = vector.shape_cast %13 : vector<1xf32> to vector<1x1x1xf32>
      %15 = vector.extract %14[0, 0, 0] : f32 from vector<1x1x1xf32>
      %16 = vector.broadcast %15 : f32 to vector<1x8x128xf32>
      %c0_6 = arith.constant 0 : index
      %c0_7 = arith.constant 0 : index
      %c0_8 = arith.constant 0 : index
      %17 = vector.load %arg4[%c0_6, %c0_7, %c0_8] : memref<1x8x128xf32, #tpu.memory_space<vmem>>, vector<1x8x128xf32>
      tpu.vector_store %arg4[%c0_6, %c0_7, %c0_8], %16 {strides = array<i32>} : memref<1x8x128xf32, #tpu.memory_space<vmem>>, vector<1x8x128xf32>,
    } else {
    }
    return
  }
  func.func @transform_0(%arg0: i32, %arg1: i32) -> (i32, i32) {
    %c1_i32 = arith.constant 1 : i32
    %0 = arith.muli %arg0, %c1_i32 : i32
    %1 = arith.addi %0, %arg1 : i32
    %c0_i32 = arith.constant 0 : i32
    %2 = arith.minsi %1, %c0_i32 : i32
    %c0_i32_0 = arith.constant 0 : i32
    %c0_i32_1 = arith.constant 0 : i32
    return %2, %c0_i32_0 : i32, i32
  }
  func.func @transform_1(%arg0: i32, %arg1: i32) -> (i32, i32) {
    %c1_i32 = arith.constant 1 : i32
    %0 = arith.muli %arg0, %c1_i32 : i32
    %1 = arith.addi %0, %arg1 : i32
    %c0_i32 = arith.constant 0 : i32
    %2 = arith.minsi %1, %c0_i32 : i32
    %c0_i32_0 = arith.constant 0 : i32
    %c0_i32_1 = arith.constant 0 : i32
    return %2, %c0_i32_0 : i32, i32
  }
  func.func @transform_2(%arg0: i32, %arg1: i32) -> (i32, i32, i32) {
    %c0_i32 = arith.constant 0 : i32
    %c0_i32_0 = arith.constant 0 : i32
    %c0_i32_1 = arith.constant 0 : i32
    return %arg0, %c0_i32, %c0_i32_0 : i32, i32, i32
  }
}

</mosaic_0001>

<llo_original>
// kernel: tpu_custom_call.1
$region0: #{tpu_custom_call.1}
  #allocation0 [shape = 'u32[]', space=smem, size = 0x4, offset = 0x4, fixed_abs, tag = 'smem constant byte address 0x4 - core index']
  #allocation1 [shape = 'u32[144,128]{1,0:T(1,128)}', space=vmem, size = 0x12000, scoped, tag = 'internal scratch']
  #allocation2 [shape = 'f32[40,1]{1,0:T(8,128)}', space=vmem, size = 0x5000, scoped, tag = 'scratch operand']
  %s0 = inlined_call_operand.vmem [shape: f32[40,128], index: 0, kind: input, shape index: {}]
  %s1 = inlined_call_operand.vmem [shape: s32[40,1], index: 1, kind: input, shape index: {}]
  %s2 = inlined_call_operand.hbm [shape: f32[1,8,128], index: 2, kind: output, shape index: {}]
  %s3 = sld [smem:[#allocation0]]
  $region30: #{tpu_custom_call.1} parent=0
    _
  %s5 = ssub.s32 1, %s3
  %s6 = scalar_select 0, %s5, %s3
  $region1: #{tpu_custom_call.1} parent=0
    #allocation3 [shape = 'u8[4096]{0}', space=vmem, size = 0x1000, scoped, tag = 'output window, operand 0, single buffered']
    #allocation4 [shape = 's32[1]{0}', space=sflag, size = 0x4, scoped, tag = 'scoped memory for tpu_custom_call.1']
    %7 = vsyncpa [#allocation4], 0
    // Predicated region
    $region2: #{tpu_custom_call.1} parent=1 // pred_check
      _
    $region3: #{tpu_custom_call.1} parent=1 // pred_check_branch
      %9 = sbr.rel (0) target = $region5
    $region4: #{tpu_custom_call.1} parent=1 // pred_region
      %s10 = sadd.s32 0, 0
      %p11 = scmp.lt.s32.totalorder %s10, 0
      %s12 = scalar_select %p11, %s10, 0
      %s13 = smul.u32 5, %s12
      %p14 = scmp.lt.s32.totalorder %s13, 4
      %s15 = scalar_select %p14, %s13, 4
      %s16 = smul.addr %s15, 8
      %s17 = scalar_lea.vmem %s0, %s16
      %s18 = sadd.s32 0, 0
      %p19 = scmp.lt.s32.totalorder %s18, 0
      %s20 = scalar_select %p19, %s18, 0
      %s21 = smul.u32 5, %s20
    $region5: #{tpu_custom_call.1} parent=1 // pred_fallthru
      _
    // Predicated region
    $region6: #{tpu_custom_call.1} parent=1 // pred_check
      _
    $region7: #{tpu_custom_call.1} parent=1 // pred_check_branch
      %23 = sbr.rel (0) target = $region9
    $region8: #{tpu_custom_call.1} parent=1 // pred_region
      %s24 = sadd.s32 0, 0
      %p25 = scmp.lt.s32.totalorder %s24, 0
      %s26 = scalar_select %p25, %s24, 0
      %s27 = smul.u32 5, %s26
      %p28 = scmp.lt.s32.totalorder %s27, 4
      %s29 = scalar_select %p28, %s27, 4
      %s30 = smul.addr %s29, 8
      %s31 = scalar_lea.vmem %s1, %s30
      %s32 = sadd.s32 0, 0
      %p33 = scmp.lt.s32.totalorder %s32, 0
      %s34 = scalar_select %p33, %s32, 0
      %s35 = smul.u32 5, %s34
    $region9: #{tpu_custom_call.1} parent=1 // pred_fallthru
      _
    %s36 = sadd.s32 0, 0
    %p37 = scmp.lt.s32.totalorder %s36, 0
    %s38 = scalar_select %p37, %s36, 0
    %s39 = smul.u32 5, %s38
    %p40 = scmp.lt.s32.totalorder %s39, 4
    %s41 = scalar_select %p40, %s39, 4
    %s42 = smul.addr %s41, 8
    %s43 = scalar_lea.vmem %s0, %s42
    %s44 = sadd.s32 0, 0
    %p45 = scmp.lt.s32.totalorder %s44, 0
    %s46 = scalar_select %p45, %s44, 0
    %s47 = smul.u32 5, %s46
    %p48 = scmp.lt.s32.totalorder %s47, 4
    %s49 = scalar_select %p48, %s47, 4
    %s50 = smul.addr %s49, 8
    %s51 = scalar_lea.vmem %s1, %s50
    %s52 = sadd.s32 0, 0
    %p53 = scmp.lt.s32.totalorder %s52, 0
    %s54 = scalar_select %p53, %s52, 0
    %s55 = smul.u32 5, %s54
    %p56 = scmp.lt.s32.totalorder %s55, 4
    %s57 = scalar_select %p56, %s55, 4
    %s58 = smul.addr %s57, 8
    %s59 = scalar_lea.vmem %s0, %s58
    %s60 = sadd.s32 0, 0
    %p61 = scmp.lt.s32.totalorder %s60, 0
    %s62 = scalar_select %p61, %s60, 0
    %s63 = smul.u32 5, %s62
    %s64 = sadd.s32 0, 0
    %p65 = scmp.lt.s32.totalorder %s64, 0
    %s66 = scalar_select %p65, %s64, 0
    %s67 = smul.u32 5, %s66
    %p68 = scmp.lt.s32.totalorder %s67, 4
    %s69 = scalar_select %p68, %s67, 4
    %s70 = smul.addr %s69, 8
    %s71 = scalar_lea.vmem %s1, %s70
    %s72 = sadd.s32 0, 0
    %p73 = scmp.lt.s32.totalorder %s72, 0
    %s74 = scalar_select %p73, %s72, 0
    %s75 = smul.u32 5, %s74
    %s76 = sadd.s32 0, 0
    %p77 = scmp.eq.s32.totalorder 0, 0
    // Predicated region
    $region10: #{tpu_custom_call.1} parent=1 // pred_check
      %p78 = pneg %p77
    $region11: #{tpu_custom_call.1} parent=1 // pred_check_branch
      %80 = sbr.rel (%p78) target = $region13
    $region12: #{tpu_custom_call.1} parent=1 // pred_region
      %vm81 = vcmask 7168
      %82 = vst.msk [vmem:[#allocation2] sm:$0xff] %vm81, 0.0
      %83 = vst.msk [vmem:[#allocation2 + $0x8] sm:$0xff] %vm81, 0.0
      %84 = vst.msk [vmem:[#allocation2 + $0x10] sm:$0xff] %vm81, 0.0
      %85 = vst.msk [vmem:[#allocation2 + $0x18] sm:$0xff] %vm81, 0.0
      %86 = vst.msk [vmem:[#allocation2 + $0x20] sm:$0xff] %vm81, 0.0
    $region13: #{tpu_custom_call.1} parent=1 // pred_fallthru
      _
    %p87 = scmp.lt.s32.totalorder %s76, 1
    // Predicated region
    $region14: #{tpu_custom_call.1} parent=1 // pred_check
      %p88 = pneg %p87
    $region15: #{tpu_custom_call.1} parent=1 // pred_check_branch
      %90 = sbr.rel (%p88) target = $region17
    $region16: #{tpu_custom_call.1} parent=1 // pred_region
      %v91 = vld [vmem:[%s59] sm:$0xff]
      %v92 = vld [vmem:[%s59 + $0x8] sm:$0xff]
      %v93 = vld [vmem:[%s59 + $0x10] sm:$0xff]
      %v94 = vld [vmem:[%s59 + $0x18] sm:$0xff]
      %v95 = vld [vmem:[%s59 + $0x20] sm:$0xff]
      %v96 = vld [vmem:[%s71] sm:$0xff]
      %v97 = vld [vmem:[%s71 + $0x8] sm:$0xff]
      %v98 = vld [vmem:[%s71 + $0x10] sm:$0xff]
      %v99 = vld [vmem:[%s71 + $0x18] sm:$0xff]
      %v100 = vld [vmem:[%s71 + $0x20] sm:$0xff]
      %v101 = vlaneseq
      %v102 = vand.u32 %v101, 127
      %103 = vset.pattern.permute.xlu0 0
      %104 = vperm.xlu0 %103, %v96
      %v105 = vpop.permute.xlu0 %104
      %106 = vset.pattern.permute.xlu0 0
      %107 = vperm.xlu0 %106, %v97
      %v108 = vpop.permute.xlu0 %107
      %109 = vset.pattern.permute.xlu0 0
      %110 = vperm.xlu0 %109, %v98
      %v111 = vpop.permute.xlu0 %110
      %112 = vset.pattern.permute.xlu0 0
      %113 = vperm.xlu0 %112, %v99
      %v114 = vpop.permute.xlu0 %113
      %115 = vset.pattern.permute.xlu0 0
      %116 = vperm.xlu0 %115, %v100
      %v117 = vpop.permute.xlu0 %116
      %vm118 = vcmp.eq.s32.totalorder %v102, %v105
      %vm119 = vcmp.eq.s32.totalorder %v102, %v108
      %vm120 = vcmp.eq.s32.totalorder %v102, %v111
      %vm121 = vcmp.eq.s32.totalorder %v102, %v114
      %vm122 = vcmp.eq.s32.totalorder %v102, %v117
      %v123 = vsel %vm118, %v91, 0.0
      %v124 = vsel %vm119, %v92, 0.0
      %v125 = vsel %vm120, %v93, 0.0
      %v126 = vsel %vm121, %v94, 0.0
      %v127 = vsel %vm122, %v95, 0.0
      %128 = vadd.xlane.f32.xlu0 %v123
      %v129 = vpop.xlane.xlu0 %128
      %130 = vadd.xlane.f32.xlu0 %v124
      %v131 = vpop.xlane.xlu0 %130
      %132 = vadd.xlane.f32.xlu0 %v125
      %v133 = vpop.xlane.xlu0 %132
      %134 = vadd.xlane.f32.xlu0 %v126
      %v135 = vpop.xlane.xlu0 %134
      %136 = vadd.xlane.f32.xlu0 %v127
      %v137 = vpop.xlane.xlu0 %136
      %v138 = vmul.f32 %v91, %v91
      %v139 = vmul.f32 %v92, %v92
      %v140 = vmul.f32 %v93, %v93
      %v141 = vmul.f32 %v94, %v94
      %v142 = vmul.f32 %v95, %v95
      %143 = vadd.xlane.f32.xlu0 %v138
      %v144 = vpop.xlane.xlu0 %143
      %145 = vadd.xlane.f32.xlu0 %v139
      %v146 = vpop.xlane.xlu0 %145
      %147 = vadd.xlane.f32.xlu0 %v140
      %v148 = vpop.xlane.xlu0 %147
      %149 = vadd.xlane.f32.xlu0 %v141
      %v150 = vpop.xlane.xlu0 %149
      %151 = vadd.xlane.f32.xlu0 %v142
      %v152 = vpop.xlane.xlu0 %151
      %v153 = vrsqrt.pop %v144
      %v154 = vmul.f32 %v144, %v153
      %vm155 = vcmp.eq.f32.partialorder %v144, inf
      %v156 = vsel %vm155, %v144, %v154
      %vm157 = vcmp.eq.f32.partialorder %v144, 0.0
      %v158 = vand.u32 %v144, 2147483648
      %v159 = vsel %vm157, %v158, %v156
      %v160 = vrsqrt.pop %v146
      %v161 = vmul.f32 %v146, %v160
      %vm162 = vcmp.eq.f32.partialorder %v146, inf
      %v163 = vsel %vm162, %v146, %v161
      %vm164 = vcmp.eq.f32.partialorder %v146, 0.0
      %v165 = vand.u32 %v146, 2147483648
      %v166 = vsel %vm164, %v165, %v163
      %v167 = vrsqrt.pop %v148
      %v168 = vmul.f32 %v148, %v167
      %vm169 = vcmp.eq.f32.partialorder %v148, inf
      %v170 = vsel %vm169, %v148, %v168
      %vm171 = vcmp.eq.f32.partialorder %v148, 0.0
      %v172 = vand.u32 %v148, 2147483648
      %v173 = vsel %vm171, %v172, %v170
      %v174 = vrsqrt.pop %v150
      %v175 = vmul.f32 %v150, %v174
      %vm176 = vcmp.eq.f32.partialorder %v150, inf
      %v177 = vsel %vm176, %v150, %v175
      %vm178 = vcmp.eq.f32.partialorder %v150, 0.0
      %v179 = vand.u32 %v150, 2147483648
      %v180 = vsel %vm178, %v179, %v177
      %v181 = vrsqrt.pop %v152
      %v182 = vmul.f32 %v152, %v181
      %vm183 = vcmp.eq.f32.partialorder %v152, inf
      %v184 = vsel %vm183, %v152, %v182
      %vm185 = vcmp.eq.f32.partialorder %v152, 0.0
      %v186 = vand.u32 %v152, 2147483648
      %v187 = vsel %vm185, %v186, %v184
      %v188 = vmax.f32 %v159, 1e-08
      %v189 = vmax.f32 %v166, 1e-08
      %v190 = vmax.f32 %v173, 1e-08
      %v191 = vmax.f32 %v180, 1e-08
      %v192 = vmax.f32 %v187, 1e-08
      %v193 = vrcp.pop %v188
      %v194 = vmul.f32 1.0, %v193
      %v195 = vrcp.pop %v189
      %v196 = vmul.f32 1.0, %v195
      %v197 = vrcp.pop %v190
      %v198 = vmul.f32 1.0, %v197
      %v199 = vrcp.pop %v191
      %v200 = vmul.f32 1.0, %v199
      %v201 = vrcp.pop %v192
      %v202 = vmul.f32 1.0, %v201
      %v203 = vmax.f32 %v159, 1e-12
      %v204 = vmax.f32 %v166, 1e-12
      %v205 = vmax.f32 %v173, 1e-12
      %v206 = vmax.f32 %v180, 1e-12
      %v207 = vmax.f32 %v187, 1e-12
      %v208 = vrcp.pop %v203
      %v209 = vmul.f32 1.0, %v208
      %v210 = vrcp.pop %v204
      %v211 = vmul.f32 1.0, %v210
      %v212 = vrcp.pop %v205
      %v213 = vmul.f32 1.0, %v212
      %v214 = vrcp.pop %v206
      %v215 = vmul.f32 1.0, %v214
      %v216 = vrcp.pop %v207
      %v217 = vmul.f32 1.0, %v216
      %v218 = vmul.f32 %v129, %v194
      %v219 = vmul.f32 %v131, %v196
      %v220 = vmul.f32 %v133, %v198
      %v221 = vmul.f32 %v135, %v200
      %v222 = vmul.f32 %v137, %v202
      %v223 = vmul.f32 %v91, %v209
      %v224 = vmul.f32 %v92, %v211
      %v225 = vmul.f32 %v93, %v213
      %v226 = vmul.f32 %v94, %v215
      %v227 = vmul.f32 %v95, %v217
      %v228 = vmul.f32 %v223, 1.442695
      %v229 = vpow.pop %v228
      %v230 = vmul.f32 %v224, 1.442695
      %v231 = vpow.pop %v230
      %v232 = vmul.f32 %v225, 1.442695
      %v233 = vpow.pop %v232
      %v234 = vmul.f32 %v226, 1.442695
      %v235 = vpow.pop %v234
      %v236 = vmul.f32 %v227, 1.442695
      %v237 = vpow.pop %v236
      %238 = vadd.xlane.f32.xlu0 %v229
      %v239 = vpop.xlane.xlu0 %238
      %240 = vadd.xlane.f32.xlu0 %v231
      %v241 = vpop.xlane.xlu0 %240
      %242 = vadd.xlane.f32.xlu0 %v233
      %v243 = vpop.xlane.xlu0 %242
      %244 = vadd.xlane.f32.xlu0 %v235
      %v245 = vpop.xlane.xlu0 %244
      %246 = vadd.xlane.f32.xlu0 %v237
      %v247 = vpop.xlane.xlu0 %246
      %v248 = vlog2.pop %v239
      %v249 = vmul.f32 %v248, 0.6931472
      %v250 = vlog2.pop %v241
      %v251 = vmul.f32 %v250, 0.6931472
      %v252 = vlog2.pop %v243
      %v253 = vmul.f32 %v252, 0.6931472
      %v254 = vlog2.pop %v245
      %v255 = vmul.f32 %v254, 0.6931472
      %v256 = vlog2.pop %v247
      %v257 = vmul.f32 %v256, 0.6931472
      %v258 = vmul.f32 %v129, %v209
      %v259 = vmul.f32 %v131, %v211
      %v260 = vmul.f32 %v133, %v213
      %v261 = vmul.f32 %v135, %v215
      %v262 = vmul.f32 %v137, %v217
      %v263 = vsub.f32 %v249, %v258
      %v264 = vsub.f32 %v251, %v259
      %v265 = vsub.f32 %v253, %v260
      %v266 = vsub.f32 %v255, %v261
      %v267 = vsub.f32 %v257, %v262
      %v268 = vsub.f32 0.0, %v263
      %v269 = vsub.f32 0.0, %v264
      %v270 = vsub.f32 0.0, %v265
      %v271 = vsub.f32 0.0, %v266
      %v272 = vsub.f32 0.0, %v267
      %v273 = vmul.f32 %v268, 1.442695
      %v274 = vpow.pop %v273
      %v275 = vmul.f32 %v269, 1.442695
      %v276 = vpow.pop %v275
      %v277 = vmul.f32 %v270, 1.442695
      %v278 = vpow.pop %v277
      %v279 = vmul.f32 %v271, 1.442695
      %v280 = vpow.pop %v279
      %v281 = vmul.f32 %v272, 1.442695
      %v282 = vpow.pop %v281
      %v283 = vsub.f32 1.0, %v274
      %v284 = vsub.f32 1.0, %v276
      %v285 = vsub.f32 1.0, %v278
      %v286 = vsub.f32 1.0, %v280
      %v287 = vsub.f32 1.0, %v282
      %v288 = vmax.f32 %v283, 0.0
      %v289 = vmax.f32 %v284, 0.0
      %v290 = vmax.f32 %v285, 0.0
      %v291 = vmax.f32 %v286, 0.0
      %v292 = vmax.f32 %v287, 0.0
      %v293 = vmul.f32 %v288, %v288
      %v294 = vmul.f32 %v289, %v289
      %v295 = vmul.f32 %v290, %v290
      %v296 = vmul.f32 %v291, %v291
      %v297 = vmul.f32 %v292, %v292
      %v298 = vmul.f32 %v293, %v263
      %v299 = vmul.f32 %v294, %v264
      %v300 = vmul.f32 %v295, %v265
      %v301 = vmul.f32 %v296, %v266
      %v302 = vmul.f32 %v297, %v267
      %v303 = vsub.f32 1.0, %v218
      %v304 = vsub.f32 1.0, %v219
      %v305 = vsub.f32 1.0, %v220
      %v306 = vsub.f32 1.0, %v221
      %v307 = vsub.f32 1.0, %v222
      %v308 = vmul.f32 %v298, 0.1
      %v309 = vmul.f32 %v299, 0.1
      %v310 = vmul.f32 %v300, 0.1
      %v311 = vmul.f32 %v301, 0.1
      %v312 = vmul.f32 %v302, 0.1
      %v313 = vadd.f32 %v303, %v308
      %v314 = vadd.f32 %v304, %v309
      %v315 = vadd.f32 %v305, %v310
      %v316 = vadd.f32 %v306, %v311
      %v317 = vadd.f32 %v307, %v312
      %s318 = smul.u32 %s76, 40
      %v319 = vlaneseq
      %v320 = vshrl.u32 %v319, 7
      %v321 = vadd.s32 %v320, 8
      %v322 = vadd.s32 %v320, 16
      %v323 = vadd.s32 %v320, 24
      %v324 = vadd.s32 %v320, 32
      %v325 = vstv %s318
      %v326 = vadd.s32 %v325, %v320
      %v327 = vadd.s32 %v325, %v321
      %v328 = vadd.s32 %v325, %v322
      %v329 = vadd.s32 %v325, %v323
      %v330 = vadd.s32 %v325, %v324
      %vm331 = vcmp.lt.s32.totalorder %v326, 40
      %vm332 = vcmp.lt.s32.totalorder %v327, 40
      %vm333 = vcmp.lt.s32.totalorder %v328, 40
      %vm334 = vcmp.lt.s32.totalorder %v329, 40
      %vm335 = vcmp.lt.s32.totalorder %v330, 40
      %v336 = vld [vmem:[#allocation2] sm:$0xff]
      %v337 = vld [vmem:[#allocation2 + $0x8] sm:$0xff]
      %v338 = vld [vmem:[#allocation2 + $0x10] sm:$0xff]
      %v339 = vld [vmem:[#allocation2 + $0x18] sm:$0xff]
      %v340 = vld [vmem:[#allocation2 + $0x20] sm:$0xff]
      %v341 = vsel %vm331, %v313, 0.0
      %v342 = vsel %vm332, %v314, 0.0
      %v343 = vsel %vm333, %v315, 0.0
      %v344 = vsel %vm334, %v316, 0.0
      %v345 = vsel %vm335, %v317, 0.0
      %v346 = vadd.f32 %v336, %v341
      %v347 = vadd.f32 %v337, %v342
      %v348 = vadd.f32 %v338, %v343
      %v349 = vadd.f32 %v339, %v344
      %v350 = vadd.f32 %v340, %v345
      %vm351 = vcmask 7168
      %352 = vst.msk [vmem:[#allocation2] sm:$0xff] %vm351, %v346
      %353 = vst.msk [vmem:[#allocation2 + $0x8] sm:$0xff] %vm351, %v347
      %354 = vst.msk [vmem:[#allocation2 + $0x10] sm:$0xff] %vm351, %v348
      %355 = vst.msk [vmem:[#allocation2 + $0x18] sm:$0xff] %vm351, %v349
      %356 = vst.msk [vmem:[#allocation2 + $0x20] sm:$0xff] %vm351, %v350
    $region17: #{tpu_custom_call.1} parent=1 // pred_fallthru
      _
    // Predicated region
    $region18: #{tpu_custom_call.1} parent=1 // pred_check
      %p357 = pneg %p77
    $region19: #{tpu_custom_call.1} parent=1 // pred_check_branch
      %359 = sbr.rel (%p357) target = $region21
    $region20: #{tpu_custom_call.1} parent=1 // pred_region
      %v360 = vld [vmem:[#allocation2] sm:$0xff]
      %v361 = vld [vmem:[#allocation2 + $0x8] sm:$0xff]
      %v362 = vld [vmem:[#allocation2 + $0x10] sm:$0xff]
      %v363 = vld [vmem:[#allocation2 + $0x18] sm:$0xff]
      %v364 = vld [vmem:[#allocation2 + $0x20] sm:$0xff]
      %vm365 = vcmask 7168
      %v366 = vsel %vm365, %v360, 0.0
      %v367 = vsel %vm365, %v361, 0.0
      %v368 = vadd.f32 %v366, %v367
      %v369 = vsel %vm365, %v362, 0.0
      %v370 = vadd.f32 %v368, %v369
      %v371 = vsel %vm365, %v363, 0.0
      %v372 = vadd.f32 %v370, %v371
      %v373 = vsel %vm365, %v364, 0.0
      %v374 = vadd.f32 %v372, %v373
      %375 = vadd.xlane.f32.xlu0 %v374
      %v376 = vpop.xlane.xlu0 %375
      %v377 = vrot.slane %v376, 4
      %v378 = vadd.f32 %v376, %v377
      %v379 = vrot.slane %v378, 2
      %v380 = vadd.f32 %v378, %v379
      %v381 = vrot.slane %v380, 1
      %v382 = vadd.f32 %v380, %v381
      %s383 = vtos %v382
      %v384 = vstv %s383
      %385 = vst [vmem:[#allocation3] sm:$0xff] %v384
    $region21: #{tpu_custom_call.1} parent=1 // pred_fallthru
      _
    // Predicated region
    $region22: #{tpu_custom_call.1} parent=1 // pred_check
      _
    $region23: #{tpu_custom_call.1} parent=1 // pred_check_branch
      %387 = sbr.rel (0) target = $region25
    $region24: #{tpu_custom_call.1} parent=1 // pred_region
      %s389 = ssub.s32 128, 128
      %390 = vsyncadd [#allocation4], %s389
      %s392 = sshll.u32 [#allocation3], 4
      %s393 = int_to_ptr.vmem [resolvable:$true] %s392
      %395 = dma.vmem_to_hbm [thread:$0]  %s393, 128, %s2, [#allocation4]
    $region25: #{tpu_custom_call.1} parent=1 // pred_fallthru
      _
    // Predicated region
    $region26: #{tpu_custom_call.1} parent=1 // pred_check
      _
    $region27: #{tpu_custom_call.1} parent=1 // pred_check_branch
      %397 = sbr.rel (0) target = $region29
    $region28: #{tpu_custom_call.1} parent=1 // pred_region
      %398 = dma.done [#allocation4], 128
    $region29: #{tpu_custom_call.1} parent=1 // pred_fallthru
      _
    %399 = vsyncpa [#allocation4], 1

</llo_original>
